<compile_context>
chip_gen: v7x
topology: tpu7x:2x2x1
jax: 0.10.0
libtpu: 0.0.40
codegen_flags: <defaults>
</compile_context>

<pallas_src>
import jax
import jax.numpy as jnp
from jax import lax
from jax.experimental import pallas as pl
from jax.experimental.pallas import tpu as pltpu


def _linear_kernel(x_ref, w_ref, b_ref, o_ref):
    # x_ref: (B, K)   w_ref: (N, K)   b_ref: (1, N)   o_ref: (B, N)
    acc = lax.dot_general(
        x_ref[...],
        w_ref[...],
        dimension_numbers=(((1,), (1,)), ((), ())),  # contract K (last dim of both)
        preferred_element_type=jnp.float32,
    )
    o_ref[...] = (acc + b_ref[...]).astype(o_ref.dtype)


@jax.jit
def linear_model_forward(x_nchw, weight, bias):
    """Pallas equivalent of LinearModel.forward.

    x_nchw: (B, C, H, W)
    weight: (num_classes, n_elements)   -- PyTorch nn.Linear convention (NOT transposed)
    bias:   (num_classes,)
    returns: (B, num_classes)
    """
    B = x_nchw.shape[0]
    n_elements = x_nchw.shape[1] * x_nchw.shape[2] * x_nchw.shape[3]
    num_classes = weight.shape[0]

    # Glue: flatten(1) (free, contiguous reshape) and a 2-D view of the bias.
    x_flat = x_nchw.reshape(B, n_elements)
    b2d = bias.reshape(1, num_classes)

    # Whole-problem-in-VMEM: single kernel invocation, full-array blocks.
    # (For very large n_elements / batch this would be re-tiled per-generation
    #  VMEM, but at these sizes grid-step overhead dominates any tiling.)
    out = pl.pallas_call(
        _linear_kernel,
        out_shape=jax.ShapeDtypeStruct((B, num_classes), x_flat.dtype),
        in_specs=[
            pl.BlockSpec((B, n_elements), lambda: (0, 0)),
            pl.BlockSpec((num_classes, n_elements), lambda: (0, 0)),
            pl.BlockSpec((1, num_classes), lambda: (0, 0)),
        ],
        out_specs=pl.BlockSpec((B, num_classes), lambda: (0, 0)),
        compiler_params=pltpu.CompilerParams(
            vmem_limit_bytes=32 * 1024 * 1024,
        ),
    )(x_flat, weight, b2d)
    return out


if __name__ == "__main__":
    # Module defaults: input_size=(3, 32, 32) -> n_elements=3072, num_classes=10.
    B, C, H, W = 2, 3, 32, 32
    num_classes = 10
    n_elements = C * H * W

    key = jax.random.PRNGKey(0)
    kx, kw, kb = jax.random.split(key, 3)

    x = jax.random.normal(kx, (B, C, H, W), dtype=jnp.float32)
    # Deterministic params mimicking nn.Linear's uniform(-1/sqrt(in), 1/sqrt(in)).
    bound = 1.0 / (n_elements ** 0.5)
    weight = jax.random.uniform(
        kw, (num_classes, n_elements), minval=-bound, maxval=bound, dtype=jnp.float32
    )
    bias = jax.random.uniform(
        kb, (num_classes,), minval=-bound, maxval=bound, dtype=jnp.float32
    )

    out = linear_model_forward(x, weight, bias)
    out = jax.block_until_ready(out)

    # Correctness check against plain-JAX reference.
    ref = x.reshape(B, -1) @ weight.T + bias
    assert out.shape == (B, num_classes)
    assert jnp.allclose(out, ref, atol=1e-4, rtol=1e-4), "mismatch vs reference"

    print("KERNEL_OK")
</pallas_src>

<mosaic_0001>
module attributes {stable_mosaic.version = 11 : i64} {
  func.func @_linear_kernel(%arg0: memref<2x3072xf32, #tpu.memory_space<vmem>>, %arg1: memref<10x3072xf32, #tpu.memory_space<vmem>>, %arg2: memref<1x10xf32, #tpu.memory_space<vmem>>, %arg3: memref<2x10xf32, #tpu.memory_space<vmem>>) attributes {dimension_semantics = [], scalar_prefetch = 0 : i64, scratch_operands = 0 : i64, tpu.core_type = #tpu.core_type<tc>} {
    %c0 = arith.constant 0 : index
    %c0_0 = arith.constant 0 : index
    %0 = vector.load %arg0[%c0, %c0_0] : memref<2x3072xf32, #tpu.memory_space<vmem>>, vector<2x3072xf32>
    %c0_1 = arith.constant 0 : index
    %c0_2 = arith.constant 0 : index
    %1 = vector.load %arg1[%c0_1, %c0_2] : memref<10x3072xf32, #tpu.memory_space<vmem>>, vector<10x3072xf32>
    %cst = arith.constant dense<0.000000e+00> : vector<2x10xf32>
    %2 = tpu.matmul %0, %1, %cst {dimension_numbers = #tpu.dot_dimension_numbers<[1], [1], [0], [0], [0, 0, 1, 0], [], []>} : vector<2x3072xf32>, vector<10x3072xf32>, vector<2x10xf32> -> vector<2x10xf32>
    %c0_3 = arith.constant 0 : index
    %c0_4 = arith.constant 0 : index
    %3 = vector.load %arg2[%c0_3, %c0_4] : memref<1x10xf32, #tpu.memory_space<vmem>>, vector<1x10xf32>
    %4 = vector.broadcast %3 : vector<1x10xf32> to vector<2x10xf32>
    %5 = arith.addf %2, %4 : vector<2x10xf32>
    %c0_5 = arith.constant 0 : index
    %c0_6 = arith.constant 0 : index
    %6 = vector.load %arg3[%c0_5, %c0_6] : memref<2x10xf32, #tpu.memory_space<vmem>>, vector<2x10xf32>
    tpu.vector_store %arg3[%c0_5, %c0_6], %5 {strides = array<i32>} : memref<2x10xf32, #tpu.memory_space<vmem>>, vector<2x10xf32>,
    return
  }
}

</mosaic_0001>

<llo_original>
// kernel: linear_model_forward.1
$region0: #{linear_model_forward.1}
  #allocation0 [shape = 'u32[]', space=smem, size = 0x4, offset = 0x4, fixed_abs, tag = 'smem constant byte address 0x4 - core index']
  #allocation1 [shape = 'u32[144,128]{1,0:T(1,128)}', space=vmem, size = 0x12000, scoped, tag = 'internal scratch']
  %s0 = inlined_call_operand.vmem [shape: f32[2,3072], index: 0, kind: input, shape index: {}]
  %s1 = inlined_call_operand.hbm [shape: f32[10,3072], index: 1, kind: input, shape index: {}]
  %s2 = inlined_call_operand.vmem [shape: f32[1,10], index: 2, kind: input, shape index: {}]
  %s3 = inlined_call_operand.hbm [shape: f32[2,10], index: 3, kind: output, shape index: {}]
  %s4 = sld [smem:[#allocation0]]
  $region26: #{linear_model_forward.1} parent=0
    _
  %s6 = ssub.s32 1, %s4
  %s7 = scalar_select 0, %s6, %s4
  $region1: #{linear_model_forward.1} parent=0
    #allocation2 [shape = 'u8[196608]{0}', space=vmem, size = 0x30000, scoped, tag = 'input window, operand 1, single buffered']
    #allocation3 [shape = 's32[1]{0}', space=sflag, size = 0x4, scoped, tag = 'scoped memory for linear_model_forward.1']
    #allocation4 [shape = 's32[1]{0}', space=sflag, size = 0x4, scoped, tag = 'scoped memory for linear_model_forward.1']
    #allocation5 [shape = 'u8[1024]{0}', space=vmem, size = 0x400, scoped, tag = 'output window, operand 0, single buffered']
    %8 = vsyncpa [#allocation3], 0
    %9 = vsyncpa [#allocation4], 0
    // Predicated region
    $region2: #{linear_model_forward.1} parent=1 // pred_check
      _
    $region3: #{linear_model_forward.1} parent=1 // pred_check_branch
      %11 = sbr.rel (0) target = $region5
    $region4: #{linear_model_forward.1} parent=1 // pred_region
      _
    $region5: #{linear_model_forward.1} parent=1 // pred_fallthru
      _
    // Predicated region
    $region6: #{linear_model_forward.1} parent=1 // pred_check
      _
    $region7: #{linear_model_forward.1} parent=1 // pred_check_branch
      %13 = sbr.rel (0) target = $region9
    $region8: #{linear_model_forward.1} parent=1 // pred_region
      %s15 = ssub.s32 6144, 6144
      %16 = vsyncadd [#allocation3], %s15
      %s17 = sshll.u32 [#allocation2], 4
      %s18 = int_to_ptr.vmem [resolvable:$true] %s17
      %23 = dma.hbm_to_vmem [thread:$0]  %s1, 6144, %s18, [#allocation3], 3072, 3072, 192
    $region9: #{linear_model_forward.1} parent=1 // pred_fallthru
      _
    // Predicated region
    $region10: #{linear_model_forward.1} parent=1 // pred_check
      _
    $region11: #{linear_model_forward.1} parent=1 // pred_check_branch
      %25 = sbr.rel (0) target = $region13
    $region12: #{linear_model_forward.1} parent=1 // pred_region
      _
    $region13: #{linear_model_forward.1} parent=1 // pred_fallthru
      _
    // Predicated region
    $region14: #{linear_model_forward.1} parent=1 // pred_check
      _
    $region15: #{linear_model_forward.1} parent=1 // pred_check_branch
      %27 = sbr.rel (0) target = $region17
    $region16: #{linear_model_forward.1} parent=1 // pred_region
      %28 = dma.done [#allocation3], 6144
    $region17: #{linear_model_forward.1} parent=1 // pred_fallthru
      _
    %v29 = vld [vmem:[%s0] sm:$0xff]
    %v30 = vld [vmem:[%s0 + $0x8] sm:$0xff]
    %v31 = vld [vmem:[%s0 + $0x10] sm:$0xff]
    %v32 = vld [vmem:[%s0 + $0x18] sm:$0xff]
    %v33 = vld [vmem:[%s0 + $0x20] sm:$0xff]
    %v34 = vld [vmem:[%s0 + $0x28] sm:$0xff]
    %v35 = vld [vmem:[#allocation2] sm:$0xff]
    %v36 = vld [vmem:[#allocation2 + $0x8] sm:$0xff]
    %v37 = vld [vmem:[#allocation2 + $0x10] sm:$0xff]
    %v38 = vld [vmem:[#allocation2 + $0x18] sm:$0xff]
    %v39 = vld [vmem:[#allocation2 + $0x20] sm:$0xff]
    %v40 = vld [vmem:[#allocation2 + $0x28] sm:$0xff]
    %v41 = vld [vmem:[#allocation2 + $0x30] sm:$0xff]
    %v42 = vld [vmem:[#allocation2 + $0x38] sm:$0xff]
    %v43 = vld [vmem:[#allocation2 + $0x40] sm:$0xff]
    %v44 = vld [vmem:[#allocation2 + $0x48] sm:$0xff]
    %v45 = vld [vmem:[#allocation2 + $0x50] sm:$0xff]
    %v46 = vld [vmem:[#allocation2 + $0x58] sm:$0xff]
    %v47 = vld [vmem:[#allocation2 + $0x60] sm:$0xff]
    %v48 = vld [vmem:[#allocation2 + $0x68] sm:$0xff]
    %v49 = vld [vmem:[#allocation2 + $0x70] sm:$0xff]
    %v50 = vld [vmem:[#allocation2 + $0x78] sm:$0xff]
    %v51 = vld [vmem:[#allocation2 + $0x80] sm:$0xff]
    %v52 = vld [vmem:[#allocation2 + $0x88] sm:$0xff]
    %v53 = vld [vmem:[#allocation2 + $0x90] sm:$0xff]
    %v54 = vld [vmem:[#allocation2 + $0x98] sm:$0xff]
    %v55 = vld [vmem:[#allocation2 + $0xa0] sm:$0xff]
    %v56 = vld [vmem:[#allocation2 + $0xa8] sm:$0xff]
    %v57 = vld [vmem:[#allocation2 + $0xb0] sm:$0xff]
    %v58 = vld [vmem:[#allocation2 + $0xb8] sm:$0xff]
    %v59 = vld [vmem:[#allocation2 + $0xc0] sm:$0x3]
    %v60 = vld [vmem:[#allocation2 + $0xc8] sm:$0x3]
    %v61 = vld [vmem:[#allocation2 + $0xd0] sm:$0x3]
    %v62 = vld [vmem:[#allocation2 + $0xd8] sm:$0x3]
    %v63 = vld [vmem:[#allocation2 + $0xe0] sm:$0x3]
    %v64 = vld [vmem:[#allocation2 + $0xe8] sm:$0x3]
    %v65 = vld [vmem:[#allocation2 + $0xf0] sm:$0x3]
    %v66 = vld [vmem:[#allocation2 + $0xf8] sm:$0x3]
    %v67 = vld [vmem:[#allocation2 + $0x100] sm:$0x3]
    %v68 = vld [vmem:[#allocation2 + $0x108] sm:$0x3]
    %v69 = vld [vmem:[#allocation2 + $0x110] sm:$0x3]
    %v70 = vld [vmem:[#allocation2 + $0x118] sm:$0x3]
    %v71 = vld [vmem:[#allocation2 + $0x120] sm:$0x3]
    %v72 = vld [vmem:[#allocation2 + $0x128] sm:$0x3]
    %v73 = vld [vmem:[#allocation2 + $0x130] sm:$0x3]
    %v74 = vld [vmem:[#allocation2 + $0x138] sm:$0x3]
    %v75 = vld [vmem:[#allocation2 + $0x140] sm:$0x3]
    %v76 = vld [vmem:[#allocation2 + $0x148] sm:$0x3]
    %v77 = vld [vmem:[#allocation2 + $0x150] sm:$0x3]
    %v78 = vld [vmem:[#allocation2 + $0x158] sm:$0x3]
    %v79 = vld [vmem:[#allocation2 + $0x160] sm:$0x3]
    %v80 = vld [vmem:[#allocation2 + $0x168] sm:$0x3]
    %v81 = vld [vmem:[#allocation2 + $0x170] sm:$0x3]
    %v82 = vld [vmem:[#allocation2 + $0x178] sm:$0x3]
    %v83 = vld [vmem:[%s2] sm:$0x1]
    %v85 = vlaneseq
    %v86 = vshrl.u32 %v85, 7
    %v87 = vsub.s32 0, %v86
    %v88 = vrot.slane %v83, %v87
    %v96 = vcombine.high %v29, %v29
    %v98 = vunpack.c.l.s4 1983009808
    %v99 = vunpack.c.0.s8 %v98
    %v100 = vlaneseq
    %v101 = vshrl.u32 %v100, 7
    %v102 = vsub.s32 %v99, %v101
    %v103 = vrot.slane %v29, %v102
    %v105 = vunpack.c.l.s4 1983009808
    %v106 = vunpack.c.0.s8 %v105
    %v107 = vlaneseq
    %v108 = vshrl.u32 %v107, 7
    %v109 = vsub.s32 %v106, %v108
    %v110 = vrot.slane %v96, %v109
    %v111 = vcombine.high %v103, %v103
    %v112 = vcombine.high %v110, %v110
    %v113 = vcombine.high %v30, %v30
    %v115 = vunpack.c.l.s4 1983009808
    %v116 = vunpack.c.0.s8 %v115
    %v117 = vlaneseq
    %v118 = vshrl.u32 %v117, 7
    %v119 = vsub.s32 %v116, %v118
    %v120 = vrot.slane %v30, %v119
    %v122 = vunpack.c.l.s4 1983009808
    %v123 = vunpack.c.0.s8 %v122
    %v124 = vlaneseq
    %v125 = vshrl.u32 %v124, 7
    %v126 = vsub.s32 %v123, %v125
    %v127 = vrot.slane %v113, %v126
    %v128 = vcombine.high %v120, %v120
    %v129 = vcombine.high %v127, %v127
    %v130 = vcombine.high %v31, %v31
    %v132 = vunpack.c.l.s4 1983009808
    %v133 = vunpack.c.0.s8 %v132
    %v134 = vlaneseq
    %v135 = vshrl.u32 %v134, 7
    %v136 = vsub.s32 %v133, %v135
    %v137 = vrot.slane %v31, %v136
    %v139 = vunpack.c.l.s4 1983009808
    %v140 = vunpack.c.0.s8 %v139
    %v141 = vlaneseq
    %v142 = vshrl.u32 %v141, 7
    %v143 = vsub.s32 %v140, %v142
    %v144 = vrot.slane %v130, %v143
    %v145 = vcombine.high %v137, %v137
    %v146 = vcombine.high %v144, %v144
    %v147 = vcombine.high %v32, %v32
    %v149 = vunpack.c.l.s4 1983009808
    %v150 = vunpack.c.0.s8 %v149
    %v151 = vlaneseq
    %v152 = vshrl.u32 %v151, 7
    %v153 = vsub.s32 %v150, %v152
    %v154 = vrot.slane %v32, %v153
    %v156 = vunpack.c.l.s4 1983009808
    %v157 = vunpack.c.0.s8 %v156
    %v158 = vlaneseq
    %v159 = vshrl.u32 %v158, 7
    %v160 = vsub.s32 %v157, %v159
    %v161 = vrot.slane %v147, %v160
    %v162 = vcombine.high %v154, %v154
    %v163 = vcombine.high %v161, %v161
    %v164 = vcombine.high %v33, %v33
    %v166 = vunpack.c.l.s4 1983009808
    %v167 = vunpack.c.0.s8 %v166
    %v168 = vlaneseq
    %v169 = vshrl.u32 %v168, 7
    %v170 = vsub.s32 %v167, %v169
    %v171 = vrot.slane %v33, %v170
    %v173 = vunpack.c.l.s4 1983009808
    %v174 = vunpack.c.0.s8 %v173
    %v175 = vlaneseq
    %v176 = vshrl.u32 %v175, 7
    %v177 = vsub.s32 %v174, %v176
    %v178 = vrot.slane %v164, %v177
    %v179 = vcombine.high %v171, %v171
    %v180 = vcombine.high %v178, %v178
    %v181 = vcombine.high %v34, %v34
    %v183 = vunpack.c.l.s4 1983009808
    %v184 = vunpack.c.0.s8 %v183
    %v185 = vlaneseq
    %v186 = vshrl.u32 %v185, 7
    %v187 = vsub.s32 %v184, %v186
    %v188 = vrot.slane %v34, %v187
    %v190 = vunpack.c.l.s4 1983009808
    %v191 = vunpack.c.0.s8 %v190
    %v192 = vlaneseq
    %v193 = vshrl.u32 %v192, 7
    %v194 = vsub.s32 %v191, %v193
    %v195 = vrot.slane %v181, %v194
    %v196 = vcombine.high %v188, %v188
    %v197 = vcombine.high %v195, %v195
    %222 = vmatprep.subr.mxu0 %v36
    %223 = vmatpush1.xpose.msra.mxu0 %v35
    %224 = vmatprep.subr.mxu0 %v60
    %225 = vmatpush1.xpose.msra.mxu0 %v59
    %226 = vmatprep.subr.mxu0 0.0
    %227 = vmatpush1.xpose.msra.mxu0 0.0
    %228 = vmatprep.subr.mxu0 0.0
    %229 = vmatpush1.xpose.msra.mxu0 0.0
    %230 = vmatprep.subr.mxu0 0.0
    %231 = vmatpush1.xpose.msra.mxu0 0.0
    %232 = vmatprep.subr.mxu0 0.0
    %233 = vmatpush1.xpose.msra.mxu0 0.0
    %234 = vmatprep.subr.mxu0 0.0
    %235 = vmatpush1.xpose.msra.mxu0 0.0
    %236 = vmatprep.subr.mxu0 0.0
    %237 = vmatpush1.xpose.msra.mxu0 0.0
    %238 = vmatprep.subr.mxu0 0.0
    %239 = vmatpush1.xpose.msra.mxu0 0.0
    %240 = vmatprep.subr.mxu0 0.0
    %241 = vmatpush1.xpose.msra.mxu0 0.0
    %242 = vmatprep.subr.mxu0 0.0
    %243 = vmatpush1.xpose.msra.mxu0 0.0
    %244 = vmatprep.subr.mxu0 0.0
    %245 = vmatpush1.xpose.msra.mxu0 0.0
    %246 = vmatprep.subr.mxu0 0.0
    %247 = vmatpush1.xpose.msra.mxu0 0.0
    %248 = vmatprep.subr.mxu0 0.0
    %249 = vmatpush1.xpose.msra.mxu0 0.0
    %250 = vmatprep.subr.mxu0 0.0
    %251 = vmatpush1.xpose.msra.mxu0 0.0
    %252 = vmatprep.subr.mxu0 0.0
    %253 = vmatpush1.xpose.msra.mxu0 0.0
    %254 = vmatprep.subr.mxu0 0.0
    %255 = vmatpush1.xpose.msra.mxu0 0.0
    %256 = vmatprep.subr.mxu0 0.0
    %257 = vmatpush1.xpose.msra.mxu0 0.0
    %258 = vmatprep.subr.mxu0 0.0
    %259 = vmatpush1.xpose.msra.mxu0 0.0
    %260 = vmatprep.subr.mxu0 0.0
    %261 = vmatpush1.xpose.msra.mxu0 0.0
    %262 = vmatprep.subr.mxu0 0.0
    %263 = vmatpush1.xpose.msra.mxu0 0.0
    %264 = vmatprep.subr.mxu0 0.0
    %265 = vmatpush1.xpose.msra.mxu0 0.0
    %266 = vmatprep.subr.mxu0 0.0
    %267 = vmatpush1.xpose.msra.mxu0 0.0
    %268 = vmatprep.subr.mxu0 0.0
    %269 = vmatpush1.xpose.msra.mxu0 0.0
    %270 = vmatprep.subr.mxu0 0.0
    %271 = vmatpush1.xpose.msra.mxu0 0.0
    %272 = vmatprep.subr.mxu0 0.0
    %273 = vmatpush1.xpose.msra.mxu0 0.0
    %274 = vmatprep.subr.mxu0 0.0
    %275 = vmatpush1.xpose.msra.mxu0 0.0
    %276 = vmatprep.subr.mxu0 0.0
    %277 = vmatpush1.xpose.msra.mxu0 0.0
    %278 = vmatprep.subr.mxu0 0.0
    %279 = vmatpush1.xpose.msra.mxu0 0.0
    %280 = vmatprep.subr.mxu0 0.0
    %281 = vmatpush1.xpose.msra.mxu0 0.0
    %282 = vmatprep.subr.mxu0 0.0
    %283 = vmatpush1.xpose.msra.mxu0 0.0
    %284 = vmatprep.subr.mxu0 0.0
    %285 = vmatpush1.xpose.msra.mxu0 0.0
    %286 = vmatprep.mubr.f32.mxu0 %v111
    %287 = vmatmul.mubr.f32.gmra.mrb[0].mxu0 %v103
    %v288 = vpop.f32.mrb[0].mxu0
    %v289 = vadd.f32 %v88, %v288
    %v290 = vpop.f32.mrb[0].mxu0
    %291 = vdwg.mxu0
    %292 = vmatprep.subr.mxu0 %v38
    %293 = vmatpush1.xpose.msra.mxu0 %v37
    %294 = vmatprep.subr.mxu0 %v62
    %295 = vmatpush1.xpose.msra.mxu0 %v61
    %296 = vmatprep.subr.mxu0 0.0
    %297 = vmatpush1.xpose.msra.mxu0 0.0
    %298 = vmatprep.subr.mxu0 0.0
    %299 = vmatpush1.xpose.msra.mxu0 0.0
    %300 = vmatprep.subr.mxu0 0.0
    %301 = vmatpush1.xpose.msra.mxu0 0.0
    %302 = vmatprep.subr.mxu0 0.0
    %303 = vmatpush1.xpose.msra.mxu0 0.0
    %304 = vmatprep.subr.mxu0 0.0
    %305 = vmatpush1.xpose.msra.mxu0 0.0
    %306 = vmatprep.subr.mxu0 0.0
    %307 = vmatpush1.xpose.msra.mxu0 0.0
    %308 = vmatprep.subr.mxu0 0.0
    %309 = vmatpush1.xpose.msra.mxu0 0.0
    %310 = vmatprep.subr.mxu0 0.0
    %311 = vmatpush1.xpose.msra.mxu0 0.0
    %312 = vmatprep.subr.mxu0 0.0
    %313 = vmatpush1.xpose.msra.mxu0 0.0
    %314 = vmatprep.subr.mxu0 0.0
    %315 = vmatpush1.xpose.msra.mxu0 0.0
    %316 = vmatprep.subr.mxu0 0.0
    %317 = vmatpush1.xpose.msra.mxu0 0.0
    %318 = vmatprep.subr.mxu0 0.0
    %319 = vmatpush1.xpose.msra.mxu0 0.0
    %320 = vmatprep.subr.mxu0 0.0
    %321 = vmatpush1.xpose.msra.mxu0 0.0
    %322 = vmatprep.subr.mxu0 0.0
    %323 = vmatpush1.xpose.msra.mxu0 0.0
    %324 = vmatprep.subr.mxu0 0.0
    %325 = vmatpush1.xpose.msra.mxu0 0.0
    %326 = vmatprep.subr.mxu0 0.0
    %327 = vmatpush1.xpose.msra.mxu0 0.0
    %328 = vmatprep.subr.mxu0 0.0
    %329 = vmatpush1.xpose.msra.mxu0 0.0
    %330 = vmatprep.subr.mxu0 0.0
    %331 = vmatpush1.xpose.msra.mxu0 0.0
    %332 = vmatprep.subr.mxu0 0.0
    %333 = vmatpush1.xpose.msra.mxu0 0.0
    %334 = vmatprep.subr.mxu0 0.0
    %335 = vmatpush1.xpose.msra.mxu0 0.0
    %336 = vmatprep.subr.mxu0 0.0
    %337 = vmatpush1.xpose.msra.mxu0 0.0
    %338 = vmatprep.subr.mxu0 0.0
    %339 = vmatpush1.xpose.msra.mxu0 0.0
    %340 = vmatprep.subr.mxu0 0.0
    %341 = vmatpush1.xpose.msra.mxu0 0.0
    %342 = vmatprep.subr.mxu0 0.0
    %343 = vmatpush1.xpose.msra.mxu0 0.0
    %344 = vmatprep.subr.mxu0 0.0
    %345 = vmatpush1.xpose.msra.mxu0 0.0
    %346 = vmatprep.subr.mxu0 0.0
    %347 = vmatpush1.xpose.msra.mxu0 0.0
    %348 = vmatprep.subr.mxu0 0.0
    %349 = vmatpush1.xpose.msra.mxu0 0.0
    %350 = vmatprep.subr.mxu0 0.0
    %351 = vmatpush1.xpose.msra.mxu0 0.0
    %352 = vmatprep.subr.mxu0 0.0
    %353 = vmatpush1.xpose.msra.mxu0 0.0
    %354 = vmatprep.subr.mxu0 0.0
    %355 = vmatpush1.xpose.msra.mxu0 0.0
    %356 = vmatprep.mubr.f32.mxu0 %v112
    %357 = vmatmul.mubr.f32.gmra.mrb[0].mxu0 %v110
    %v358 = vpop.f32.mrb[0].mxu0
    %v359 = vadd.f32 %v289, %v358
    %v360 = vpop.f32.mrb[0].mxu0
    %361 = vdwg.mxu0
    %362 = vmatprep.subr.mxu0 %v40
    %363 = vmatpush1.xpose.msra.mxu0 %v39
    %364 = vmatprep.subr.mxu0 %v64
    %365 = vmatpush1.xpose.msra.mxu0 %v63
    %366 = vmatprep.subr.mxu0 0.0
    %367 = vmatpush1.xpose.msra.mxu0 0.0
    %368 = vmatprep.subr.mxu0 0.0
    %369 = vmatpush1.xpose.msra.mxu0 0.0
    %370 = vmatprep.subr.mxu0 0.0
    %371 = vmatpush1.xpose.msra.mxu0 0.0
    %372 = vmatprep.subr.mxu0 0.0
    %373 = vmatpush1.xpose.msra.mxu0 0.0
    %374 = vmatprep.subr.mxu0 0.0
    %375 = vmatpush1.xpose.msra.mxu0 0.0
    %376 = vmatprep.subr.mxu0 0.0
    %377 = vmatpush1.xpose.msra.mxu0 0.0
    %378 = vmatprep.subr.mxu0 0.0
    %379 = vmatpush1.xpose.msra.mxu0 0.0
    %380 = vmatprep.subr.mxu0 0.0
    %381 = vmatpush1.xpose.msra.mxu0 0.0
    %382 = vmatprep.subr.mxu0 0.0
    %383 = vmatpush1.xpose.msra.mxu0 0.0
    %384 = vmatprep.subr.mxu0 0.0
    %385 = vmatpush1.xpose.msra.mxu0 0.0
    %386 = vmatprep.subr.mxu0 0.0
    %387 = vmatpush1.xpose.msra.mxu0 0.0
    %388 = vmatprep.subr.mxu0 0.0
    %389 = vmatpush1.xpose.msra.mxu0 0.0
    %390 = vmatprep.subr.mxu0 0.0
    %391 = vmatpush1.xpose.msra.mxu0 0.0
    %392 = vmatprep.subr.mxu0 0.0
    %393 = vmatpush1.xpose.msra.mxu0 0.0
    %394 = vmatprep.subr.mxu0 0.0
    %395 = vmatpush1.xpose.msra.mxu0 0.0
    %396 = vmatprep.subr.mxu0 0.0
    %397 = vmatpush1.xpose.msra.mxu0 0.0
    %398 = vmatprep.subr.mxu0 0.0
    %399 = vmatpush1.xpose.msra.mxu0 0.0
    %400 = vmatprep.subr.mxu0 0.0
    %401 = vmatpush1.xpose.msra.mxu0 0.0
    %402 = vmatprep.subr.mxu0 0.0
    %403 = vmatpush1.xpose.msra.mxu0 0.0
    %404 = vmatprep.subr.mxu0 0.0
    %405 = vmatpush1.xpose.msra.mxu0 0.0
    %406 = vmatprep.subr.mxu0 0.0
    %407 = vmatpush1.xpose.msra.mxu0 0.0
    %408 = vmatprep.subr.mxu0 0.0
    %409 = vmatpush1.xpose.msra.mxu0 0.0
    %410 = vmatprep.subr.mxu0 0.0
    %411 = vmatpush1.xpose.msra.mxu0 0.0
    %412 = vmatprep.subr.mxu0 0.0
    %413 = vmatpush1.xpose.msra.mxu0 0.0
    %414 = vmatprep.subr.mxu0 0.0
    %415 = vmatpush1.xpose.msra.mxu0 0.0
    %416 = vmatprep.subr.mxu0 0.0
    %417 = vmatpush1.xpose.msra.mxu0 0.0
    %418 = vmatprep.subr.mxu0 0.0
    %419 = vmatpush1.xpose.msra.mxu0 0.0
    %420 = vmatprep.subr.mxu0 0.0
    %421 = vmatpush1.xpose.msra.mxu0 0.0
    %422 = vmatprep.subr.mxu0 0.0
    %423 = vmatpush1.xpose.msra.mxu0 0.0
    %424 = vmatprep.subr.mxu0 0.0
    %425 = vmatpush1.xpose.msra.mxu0 0.0
    %426 = vmatprep.mubr.f32.mxu0 %v128
    %427 = vmatmul.mubr.f32.gmra.mrb[0].mxu0 %v120
    %v428 = vpop.f32.mrb[0].mxu0
    %v429 = vadd.f32 %v359, %v428
    %v430 = vpop.f32.mrb[0].mxu0
    %431 = vdwg.mxu0
    %432 = vmatprep.subr.mxu0 %v42
    %433 = vmatpush1.xpose.msra.mxu0 %v41
    %434 = vmatprep.subr.mxu0 %v66
    %435 = vmatpush1.xpose.msra.mxu0 %v65
    %436 = vmatprep.subr.mxu0 0.0
    %437 = vmatpush1.xpose.msra.mxu0 0.0
    %438 = vmatprep.subr.mxu0 0.0
    %439 = vmatpush1.xpose.msra.mxu0 0.0
    %440 = vmatprep.subr.mxu0 0.0
    %441 = vmatpush1.xpose.msra.mxu0 0.0
    %442 = vmatprep.subr.mxu0 0.0
    %443 = vmatpush1.xpose.msra.mxu0 0.0
    %444 = vmatprep.subr.mxu0 0.0
    %445 = vmatpush1.xpose.msra.mxu0 0.0
    %446 = vmatprep.subr.mxu0 0.0
    %447 = vmatpush1.xpose.msra.mxu0 0.0
    %448 = vmatprep.subr.mxu0 0.0
    %449 = vmatpush1.xpose.msra.mxu0 0.0
    %450 = vmatprep.subr.mxu0 0.0
    %451 = vmatpush1.xpose.msra.mxu0 0.0
    %452 = vmatprep.subr.mxu0 0.0
    %453 = vmatpush1.xpose.msra.mxu0 0.0
    %454 = vmatprep.subr.mxu0 0.0
    %455 = vmatpush1.xpose.msra.mxu0 0.0
    %456 = vmatprep.subr.mxu0 0.0
    %457 = vmatpush1.xpose.msra.mxu0 0.0
    %458 = vmatprep.subr.mxu0 0.0
    %459 = vmatpush1.xpose.msra.mxu0 0.0
    %460 = vmatprep.subr.mxu0 0.0
    %461 = vmatpush1.xpose.msra.mxu0 0.0
    %462 = vmatprep.subr.mxu0 0.0
    %463 = vmatpush1.xpose.msra.mxu0 0.0
    %464 = vmatprep.subr.mxu0 0.0
    %465 = vmatpush1.xpose.msra.mxu0 0.0
    %466 = vmatprep.subr.mxu0 0.0
    %467 = vmatpush1.xpose.msra.mxu0 0.0
    %468 = vmatprep.subr.mxu0 0.0
    %469 = vmatpush1.xpose.msra.mxu0 0.0
    %470 = vmatprep.subr.mxu0 0.0
    %471 = vmatpush1.xpose.msra.mxu0 0.0
    %472 = vmatprep.subr.mxu0 0.0
    %473 = vmatpush1.xpose.msra.mxu0 0.0
    %474 = vmatprep.subr.mxu0 0.0
    %475 = vmatpush1.xpose.msra.mxu0 0.0
    %476 = vmatprep.subr.mxu0 0.0
    %477 = vmatpush1.xpose.msra.mxu0 0.0
    %478 = vmatprep.subr.mxu0 0.0
    %479 = vmatpush1.xpose.msra.mxu0 0.0
    %480 = vmatprep.subr.mxu0 0.0
    %481 = vmatpush1.xpose.msra.mxu0 0.0
    %482 = vmatprep.subr.mxu0 0.0
    %483 = vmatpush1.xpose.msra.mxu0 0.0
    %484 = vmatprep.subr.mxu0 0.0
    %485 = vmatpush1.xpose.msra.mxu0 0.0
    %486 = vmatprep.subr.mxu0 0.0
    %487 = vmatpush1.xpose.msra.mxu0 0.0
    %488 = vmatprep.subr.mxu0 0.0
    %489 = vmatpush1.xpose.msra.mxu0 0.0
    %490 = vmatprep.subr.mxu0 0.0
    %491 = vmatpush1.xpose.msra.mxu0 0.0
    %492 = vmatprep.subr.mxu0 0.0
    %493 = vmatpush1.xpose.msra.mxu0 0.0
    %494 = vmatprep.subr.mxu0 0.0
    %495 = vmatpush1.xpose.msra.mxu0 0.0
    %496 = vmatprep.mubr.f32.mxu0 %v129
    %497 = vmatmul.mubr.f32.gmra.mrb[0].mxu0 %v127
    %v498 = vpop.f32.mrb[0].mxu0
    %v499 = vadd.f32 %v429, %v498
    %v500 = vpop.f32.mrb[0].mxu0
    %501 = vdwg.mxu0
    %502 = vmatprep.subr.mxu0 %v44
    %503 = vmatpush1.xpose.msra.mxu0 %v43
    %504 = vmatprep.subr.mxu0 %v68
    %505 = vmatpush1.xpose.msra.mxu0 %v67
    %506 = vmatprep.subr.mxu0 0.0
    %507 = vmatpush1.xpose.msra.mxu0 0.0
    %508 = vmatprep.subr.mxu0 0.0
    %509 = vmatpush1.xpose.msra.mxu0 0.0
    %510 = vmatprep.subr.mxu0 0.0
    %511 = vmatpush1.xpose.msra.mxu0 0.0
    %512 = vmatprep.subr.mxu0 0.0
    %513 = vmatpush1.xpose.msra.mxu0 0.0
    %514 = vmatprep.subr.mxu0 0.0
    %515 = vmatpush1.xpose.msra.mxu0 0.0
    %516 = vmatprep.subr.mxu0 0.0
    %517 = vmatpush1.xpose.msra.mxu0 0.0
    %518 = vmatprep.subr.mxu0 0.0
    %519 = vmatpush1.xpose.msra.mxu0 0.0
    %520 = vmatprep.subr.mxu0 0.0
    %521 = vmatpush1.xpose.msra.mxu0 0.0
    %522 = vmatprep.subr.mxu0 0.0
    %523 = vmatpush1.xpose.msra.mxu0 0.0
    %524 = vmatprep.subr.mxu0 0.0
    %525 = vmatpush1.xpose.msra.mxu0 0.0
    %526 = vmatprep.subr.mxu0 0.0
    %527 = vmatpush1.xpose.msra.mxu0 0.0
    %528 = vmatprep.subr.mxu0 0.0
    %529 = vmatpush1.xpose.msra.mxu0 0.0
    %530 = vmatprep.subr.mxu0 0.0
    %531 = vmatpush1.xpose.msra.mxu0 0.0
    %532 = vmatprep.subr.mxu0 0.0
    %533 = vmatpush1.xpose.msra.mxu0 0.0
    %534 = vmatprep.subr.mxu0 0.0
    %535 = vmatpush1.xpose.msra.mxu0 0.0
    %536 = vmatprep.subr.mxu0 0.0
    %537 = vmatpush1.xpose.msra.mxu0 0.0
    %538 = vmatprep.subr.mxu0 0.0
    %539 = vmatpush1.xpose.msra.mxu0 0.0
    %540 = vmatprep.subr.mxu0 0.0
    %541 = vmatpush1.xpose.msra.mxu0 0.0
    %542 = vmatprep.subr.mxu0 0.0
    %543 = vmatpush1.xpose.msra.mxu0 0.0
    %544 = vmatprep.subr.mxu0 0.0
    %545 = vmatpush1.xpose.msra.mxu0 0.0
    %546 = vmatprep.subr.mxu0 0.0
    %547 = vmatpush1.xpose.msra.mxu0 0.0
    %548 = vmatprep.subr.mxu0 0.0
    %549 = vmatpush1.xpose.msra.mxu0 0.0
    %550 = vmatprep.subr.mxu0 0.0
    %551 = vmatpush1.xpose.msra.mxu0 0.0
    %552 = vmatprep.subr.mxu0 0.0
    %553 = vmatpush1.xpose.msra.mxu0 0.0
    %554 = vmatprep.subr.mxu0 0.0
    %555 = vmatpush1.xpose.msra.mxu0 0.0
    %556 = vmatprep.subr.mxu0 0.0
    %557 = vmatpush1.xpose.msra.mxu0 0.0
    %558 = vmatprep.subr.mxu0 0.0
    %559 = vmatpush1.xpose.msra.mxu0 0.0
    %560 = vmatprep.subr.mxu0 0.0
    %561 = vmatpush1.xpose.msra.mxu0 0.0
    %562 = vmatprep.subr.mxu0 0.0
    %563 = vmatpush1.xpose.msra.mxu0 0.0
    %564 = vmatprep.subr.mxu0 0.0
    %565 = vmatpush1.xpose.msra.mxu0 0.0
    %566 = vmatprep.mubr.f32.mxu0 %v145
    %567 = vmatmul.mubr.f32.gmra.mrb[0].mxu0 %v137
    %v568 = vpop.f32.mrb[0].mxu0
    %v569 = vadd.f32 %v499, %v568
    %v570 = vpop.f32.mrb[0].mxu0
    %571 = vdwg.mxu0
    %572 = vmatprep.subr.mxu0 %v46
    %573 = vmatpush1.xpose.msra.mxu0 %v45
    %574 = vmatprep.subr.mxu0 %v70
    %575 = vmatpush1.xpose.msra.mxu0 %v69
    %576 = vmatprep.subr.mxu0 0.0
    %577 = vmatpush1.xpose.msra.mxu0 0.0
    %578 = vmatprep.subr.mxu0 0.0
    %579 = vmatpush1.xpose.msra.mxu0 0.0
    %580 = vmatprep.subr.mxu0 0.0
    %581 = vmatpush1.xpose.msra.mxu0 0.0
    %582 = vmatprep.subr.mxu0 0.0
    %583 = vmatpush1.xpose.msra.mxu0 0.0
    %584 = vmatprep.subr.mxu0 0.0
    %585 = vmatpush1.xpose.msra.mxu0 0.0
    %586 = vmatprep.subr.mxu0 0.0
    %587 = vmatpush1.xpose.msra.mxu0 0.0
    %588 = vmatprep.subr.mxu0 0.0
    %589 = vmatpush1.xpose.msra.mxu0 0.0
    %590 = vmatprep.subr.mxu0 0.0
    %591 = vmatpush1.xpose.msra.mxu0 0.0
    %592 = vmatprep.subr.mxu0 0.0
    %593 = vmatpush1.xpose.msra.mxu0 0.0
    %594 = vmatprep.subr.mxu0 0.0
    %595 = vmatpush1.xpose.msra.mxu0 0.0
    %596 = vmatprep.subr.mxu0 0.0
    %597 = vmatpush1.xpose.msra.mxu0 0.0
    %598 = vmatprep.subr.mxu0 0.0
    %599 = vmatpush1.xpose.msra.mxu0 0.0
    %600 = vmatprep.subr.mxu0 0.0
    %601 = vmatpush1.xpose.msra.mxu0 0.0
    %602 = vmatprep.subr.mxu0 0.0
    %603 = vmatpush1.xpose.msra.mxu0 0.0
    %604 = vmatprep.subr.mxu0 0.0
    %605 = vmatpush1.xpose.msra.mxu0 0.0
    %606 = vmatprep.subr.mxu0 0.0
    %607 = vmatpush1.xpose.msra.mxu0 0.0
    %608 = vmatprep.subr.mxu0 0.0
    %609 = vmatpush1.xpose.msra.mxu0 0.0
    %610 = vmatprep.subr.mxu0 0.0
    %611 = vmatpush1.xpose.msra.mxu0 0.0
    %612 = vmatprep.subr.mxu0 0.0
    %613 = vmatpush1.xpose.msra.mxu0 0.0
    %614 = vmatprep.subr.mxu0 0.0
    %615 = vmatpush1.xpose.msra.mxu0 0.0
    %616 = vmatprep.subr.mxu0 0.0
    %617 = vmatpush1.xpose.msra.mxu0 0.0
    %618 = vmatprep.subr.mxu0 0.0
    %619 = vmatpush1.xpose.msra.mxu0 0.0
    %620 = vmatprep.subr.mxu0 0.0
    %621 = vmatpush1.xpose.msra.mxu0 0.0
    %622 = vmatprep.subr.mxu0 0.0
    %623 = vmatpush1.xpose.msra.mxu0 0.0
    %624 = vmatprep.subr.mxu0 0.0
    %625 = vmatpush1.xpose.msra.mxu0 0.0
    %626 = vmatprep.subr.mxu0 0.0
    %627 = vmatpush1.xpose.msra.mxu0 0.0
    %628 = vmatprep.subr.mxu0 0.0
    %629 = vmatpush1.xpose.msra.mxu0 0.0
    %630 = vmatprep.subr.mxu0 0.0
    %631 = vmatpush1.xpose.msra.mxu0 0.0
    %632 = vmatprep.subr.mxu0 0.0
    %633 = vmatpush1.xpose.msra.mxu0 0.0
    %634 = vmatprep.subr.mxu0 0.0
    %635 = vmatpush1.xpose.msra.mxu0 0.0
    %636 = vmatprep.mubr.f32.mxu0 %v146
    %637 = vmatmul.mubr.f32.gmra.mrb[0].mxu0 %v144
    %v638 = vpop.f32.mrb[0].mxu0
    %v639 = vadd.f32 %v569, %v638
    %v640 = vpop.f32.mrb[0].mxu0
    %641 = vdwg.mxu0
    %642 = vmatprep.subr.mxu0 %v48
    %643 = vmatpush1.xpose.msra.mxu0 %v47
    %644 = vmatprep.subr.mxu0 %v72
    %645 = vmatpush1.xpose.msra.mxu0 %v71
    %646 = vmatprep.subr.mxu0 0.0
    %647 = vmatpush1.xpose.msra.mxu0 0.0
    %648 = vmatprep.subr.mxu0 0.0
    %649 = vmatpush1.xpose.msra.mxu0 0.0
    %650 = vmatprep.subr.mxu0 0.0
    %651 = vmatpush1.xpose.msra.mxu0 0.0
    %652 = vmatprep.subr.mxu0 0.0
    %653 = vmatpush1.xpose.msra.mxu0 0.0
    %654 = vmatprep.subr.mxu0 0.0
    %655 = vmatpush1.xpose.msra.mxu0 0.0
    %656 = vmatprep.subr.mxu0 0.0
    %657 = vmatpush1.xpose.msra.mxu0 0.0
    %658 = vmatprep.subr.mxu0 0.0
    %659 = vmatpush1.xpose.msra.mxu0 0.0
    %660 = vmatprep.subr.mxu0 0.0
    %661 = vmatpush1.xpose.msra.mxu0 0.0
    %662 = vmatprep.subr.mxu0 0.0
    %663 = vmatpush1.xpose.msra.mxu0 0.0
    %664 = vmatprep.subr.mxu0 0.0
    %665 = vmatpush1.xpose.msra.mxu0 0.0
    %666 = vmatprep.subr.mxu0 0.0
    %667 = vmatpush1.xpose.msra.mxu0 0.0
    %668 = vmatprep.subr.mxu0 0.0
    %669 = vmatpush1.xpose.msra.mxu0 0.0
    %670 = vmatprep.subr.mxu0 0.0
    %671 = vmatpush1.xpose.msra.mxu0 0.0
    %672 = vmatprep.subr.mxu0 0.0
    %673 = vmatpush1.xpose.msra.mxu0 0.0
    %674 = vmatprep.subr.mxu0 0.0
    %675 = vmatpush1.xpose.msra.mxu0 0.0
    %676 = vmatprep.subr.mxu0 0.0
    %677 = vmatpush1.xpose.msra.mxu0 0.0
    %678 = vmatprep.subr.mxu0 0.0
    %679 = vmatpush1.xpose.msra.mxu0 0.0
    %680 = vmatprep.subr.mxu0 0.0
    %681 = vmatpush1.xpose.msra.mxu0 0.0
    %682 = vmatprep.subr.mxu0 0.0
    %683 = vmatpush1.xpose.msra.mxu0 0.0
    %684 = vmatprep.subr.mxu0 0.0
    %685 = vmatpush1.xpose.msra.mxu0 0.0
    %686 = vmatprep.subr.mxu0 0.0
    %687 = vmatpush1.xpose.msra.mxu0 0.0
    %688 = vmatprep.subr.mxu0 0.0
    %689 = vmatpush1.xpose.msra.mxu0 0.0
    %690 = vmatprep.subr.mxu0 0.0
    %691 = vmatpush1.xpose.msra.mxu0 0.0
    %692 = vmatprep.subr.mxu0 0.0
    %693 = vmatpush1.xpose.msra.mxu0 0.0
    %694 = vmatprep.subr.mxu0 0.0
    %695 = vmatpush1.xpose.msra.mxu0 0.0
    %696 = vmatprep.subr.mxu0 0.0
    %697 = vmatpush1.xpose.msra.mxu0 0.0
    %698 = vmatprep.subr.mxu0 0.0
    %699 = vmatpush1.xpose.msra.mxu0 0.0
    %700 = vmatprep.subr.mxu0 0.0
    %701 = vmatpush1.xpose.msra.mxu0 0.0
    %702 = vmatprep.subr.mxu0 0.0
    %703 = vmatpush1.xpose.msra.mxu0 0.0
    %704 = vmatprep.subr.mxu0 0.0
    %705 = vmatpush1.xpose.msra.mxu0 0.0
    %706 = vmatprep.mubr.f32.mxu0 %v162
    %707 = vmatmul.mubr.f32.gmra.mrb[0].mxu0 %v154
    %v708 = vpop.f32.mrb[0].mxu0
    %v709 = vadd.f32 %v639, %v708
    %v710 = vpop.f32.mrb[0].mxu0
    %711 = vdwg.mxu0
    %712 = vmatprep.subr.mxu0 %v50
    %713 = vmatpush1.xpose.msra.mxu0 %v49
    %714 = vmatprep.subr.mxu0 %v74
    %715 = vmatpush1.xpose.msra.mxu0 %v73
    %716 = vmatprep.subr.mxu0 0.0
    %717 = vmatpush1.xpose.msra.mxu0 0.0
    %718 = vmatprep.subr.mxu0 0.0
    %719 = vmatpush1.xpose.msra.mxu0 0.0
    %720 = vmatprep.subr.mxu0 0.0
    %721 = vmatpush1.xpose.msra.mxu0 0.0
    %722 = vmatprep.subr.mxu0 0.0
    %723 = vmatpush1.xpose.msra.mxu0 0.0
    %724 = vmatprep.subr.mxu0 0.0
    %725 = vmatpush1.xpose.msra.mxu0 0.0
    %726 = vmatprep.subr.mxu0 0.0
    %727 = vmatpush1.xpose.msra.mxu0 0.0
    %728 = vmatprep.subr.mxu0 0.0
    %729 = vmatpush1.xpose.msra.mxu0 0.0
    %730 = vmatprep.subr.mxu0 0.0
    %731 = vmatpush1.xpose.msra.mxu0 0.0
    %732 = vmatprep.subr.mxu0 0.0
    %733 = vmatpush1.xpose.msra.mxu0 0.0
    %734 = vmatprep.subr.mxu0 0.0
    %735 = vmatpush1.xpose.msra.mxu0 0.0
    %736 = vmatprep.subr.mxu0 0.0
    %737 = vmatpush1.xpose.msra.mxu0 0.0
    %738 = vmatprep.subr.mxu0 0.0
    %739 = vmatpush1.xpose.msra.mxu0 0.0
    %740 = vmatprep.subr.mxu0 0.0
    %741 = vmatpush1.xpose.msra.mxu0 0.0
    %742 = vmatprep.subr.mxu0 0.0
    %743 = vmatpush1.xpose.msra.mxu0 0.0
    %744 = vmatprep.subr.mxu0 0.0
    %745 = vmatpush1.xpose.msra.mxu0 0.0
    %746 = vmatprep.subr.mxu0 0.0
    %747 = vmatpush1.xpose.msra.mxu0 0.0
    %748 = vmatprep.subr.mxu0 0.0
    %749 = vmatpush1.xpose.msra.mxu0 0.0
    %750 = vmatprep.subr.mxu0 0.0
    %751 = vmatpush1.xpose.msra.mxu0 0.0
    %752 = vmatprep.subr.mxu0 0.0
    %753 = vmatpush1.xpose.msra.mxu0 0.0
    %754 = vmatprep.subr.mxu0 0.0
    %755 = vmatpush1.xpose.msra.mxu0 0.0
    %756 = vmatprep.subr.mxu0 0.0
    %757 = vmatpush1.xpose.msra.mxu0 0.0
    %758 = vmatprep.subr.mxu0 0.0
    %759 = vmatpush1.xpose.msra.mxu0 0.0
    %760 = vmatprep.subr.mxu0 0.0
    %761 = vmatpush1.xpose.msra.mxu0 0.0
    %762 = vmatprep.subr.mxu0 0.0
    %763 = vmatpush1.xpose.msra.mxu0 0.0
    %764 = vmatprep.subr.mxu0 0.0
    %765 = vmatpush1.xpose.msra.mxu0 0.0
    %766 = vmatprep.subr.mxu0 0.0
    %767 = vmatpush1.xpose.msra.mxu0 0.0
    %768 = vmatprep.subr.mxu0 0.0
    %769 = vmatpush1.xpose.msra.mxu0 0.0
    %770 = vmatprep.subr.mxu0 0.0
    %771 = vmatpush1.xpose.msra.mxu0 0.0
    %772 = vmatprep.subr.mxu0 0.0
    %773 = vmatpush1.xpose.msra.mxu0 0.0
    %774 = vmatprep.subr.mxu0 0.0
    %775 = vmatpush1.xpose.msra.mxu0 0.0
    %776 = vmatprep.mubr.f32.mxu0 %v163
    %777 = vmatmul.mubr.f32.gmra.mrb[0].mxu0 %v161
    %v778 = vpop.f32.mrb[0].mxu0
    %v779 = vadd.f32 %v709, %v778
    %v780 = vpop.f32.mrb[0].mxu0
    %781 = vdwg.mxu0
    %782 = vmatprep.subr.mxu0 %v52
    %783 = vmatpush1.xpose.msra.mxu0 %v51
    %784 = vmatprep.subr.mxu0 %v76
    %785 = vmatpush1.xpose.msra.mxu0 %v75
    %786 = vmatprep.subr.mxu0 0.0
    %787 = vmatpush1.xpose.msra.mxu0 0.0
    %788 = vmatprep.subr.mxu0 0.0
    %789 = vmatpush1.xpose.msra.mxu0 0.0
    %790 = vmatprep.subr.mxu0 0.0
    %791 = vmatpush1.xpose.msra.mxu0 0.0
    %792 = vmatprep.subr.mxu0 0.0
    %793 = vmatpush1.xpose.msra.mxu0 0.0
    %794 = vmatprep.subr.mxu0 0.0
    %795 = vmatpush1.xpose.msra.mxu0 0.0
    %796 = vmatprep.subr.mxu0 0.0
    %797 = vmatpush1.xpose.msra.mxu0 0.0
    %798 = vmatprep.subr.mxu0 0.0
    %799 = vmatpush1.xpose.msra.mxu0 0.0
    %800 = vmatprep.subr.mxu0 0.0
    %801 = vmatpush1.xpose.msra.mxu0 0.0
    %802 = vmatprep.subr.mxu0 0.0
    %803 = vmatpush1.xpose.msra.mxu0 0.0
    %804 = vmatprep.subr.mxu0 0.0
    %805 = vmatpush1.xpose.msra.mxu0 0.0
    %806 = vmatprep.subr.mxu0 0.0
    %807 = vmatpush1.xpose.msra.mxu0 0.0
    %808 = vmatprep.subr.mxu0 0.0
    %809 = vmatpush1.xpose.msra.mxu0 0.0
    %810 = vmatprep.subr.mxu0 0.0
    %811 = vmatpush1.xpose.msra.mxu0 0.0
    %812 = vmatprep.subr.mxu0 0.0
    %813 = vmatpush1.xpose.msra.mxu0 0.0
    %814 = vmatprep.subr.mxu0 0.0
    %815 = vmatpush1.xpose.msra.mxu0 0.0
    %816 = vmatprep.subr.mxu0 0.0
    %817 = vmatpush1.xpose.msra.mxu0 0.0
    %818 = vmatprep.subr.mxu0 0.0
    %819 = vmatpush1.xpose.msra.mxu0 0.0
    %820 = vmatprep.subr.mxu0 0.0
    %821 = vmatpush1.xpose.msra.mxu0 0.0
    %822 = vmatprep.subr.mxu0 0.0
    %823 = vmatpush1.xpose.msra.mxu0 0.0
    %824 = vmatprep.subr.mxu0 0.0
    %825 = vmatpush1.xpose.msra.mxu0 0.0
    %826 = vmatprep.subr.mxu0 0.0
    %827 = vmatpush1.xpose.msra.mxu0 0.0
    %828 = vmatprep.subr.mxu0 0.0
    %829 = vmatpush1.xpose.msra.mxu0 0.0
    %830 = vmatprep.subr.mxu0 0.0
    %831 = vmatpush1.xpose.msra.mxu0 0.0
    %832 = vmatprep.subr.mxu0 0.0
    %833 = vmatpush1.xpose.msra.mxu0 0.0
    %834 = vmatprep.subr.mxu0 0.0
    %835 = vmatpush1.xpose.msra.mxu0 0.0
    %836 = vmatprep.subr.mxu0 0.0
    %837 = vmatpush1.xpose.msra.mxu0 0.0
    %838 = vmatprep.subr.mxu0 0.0
    %839 = vmatpush1.xpose.msra.mxu0 0.0
    %840 = vmatprep.subr.mxu0 0.0
    %841 = vmatpush1.xpose.msra.mxu0 0.0
    %842 = vmatprep.subr.mxu0 0.0
    %843 = vmatpush1.xpose.msra.mxu0 0.0
    %844 = vmatprep.subr.mxu0 0.0
    %845 = vmatpush1.xpose.msra.mxu0 0.0
    %846 = vmatprep.mubr.f32.mxu0 %v179
    %847 = vmatmul.mubr.f32.gmra.mrb[0].mxu0 %v171
    %v848 = vpop.f32.mrb[0].mxu0
    %v849 = vadd.f32 %v779, %v848
    %v850 = vpop.f32.mrb[0].mxu0
    %851 = vdwg.mxu0
    %852 = vmatprep.subr.mxu0 %v54
    %853 = vmatpush1.xpose.msra.mxu0 %v53
    %854 = vmatprep.subr.mxu0 %v78
    %855 = vmatpush1.xpose.msra.mxu0 %v77
    %856 = vmatprep.subr.mxu0 0.0
    %857 = vmatpush1.xpose.msra.mxu0 0.0
    %858 = vmatprep.subr.mxu0 0.0
    %859 = vmatpush1.xpose.msra.mxu0 0.0
    %860 = vmatprep.subr.mxu0 0.0
    %861 = vmatpush1.xpose.msra.mxu0 0.0
    %862 = vmatprep.subr.mxu0 0.0
    %863 = vmatpush1.xpose.msra.mxu0 0.0
    %864 = vmatprep.subr.mxu0 0.0
    %865 = vmatpush1.xpose.msra.mxu0 0.0
    %866 = vmatprep.subr.mxu0 0.0
    %867 = vmatpush1.xpose.msra.mxu0 0.0
    %868 = vmatprep.subr.mxu0 0.0
    %869 = vmatpush1.xpose.msra.mxu0 0.0
    %870 = vmatprep.subr.mxu0 0.0
    %871 = vmatpush1.xpose.msra.mxu0 0.0
    %872 = vmatprep.subr.mxu0 0.0
    %873 = vmatpush1.xpose.msra.mxu0 0.0
    %874 = vmatprep.subr.mxu0 0.0
    %875 = vmatpush1.xpose.msra.mxu0 0.0
    %876 = vmatprep.subr.mxu0 0.0
    %877 = vmatpush1.xpose.msra.mxu0 0.0
    %878 = vmatprep.subr.mxu0 0.0
    %879 = vmatpush1.xpose.msra.mxu0 0.0
    %880 = vmatprep.subr.mxu0 0.0
    %881 = vmatpush1.xpose.msra.mxu0 0.0
    %882 = vmatprep.subr.mxu0 0.0
    %883 = vmatpush1.xpose.msra.mxu0 0.0
    %884 = vmatprep.subr.mxu0 0.0
    %885 = vmatpush1.xpose.msra.mxu0 0.0
    %886 = vmatprep.subr.mxu0 0.0
    %887 = vmatpush1.xpose.msra.mxu0 0.0
    %888 = vmatprep.subr.mxu0 0.0
    %889 = vmatpush1.xpose.msra.mxu0 0.0
    %890 = vmatprep.subr.mxu0 0.0
    %891 = vmatpush1.xpose.msra.mxu0 0.0
    %892 = vmatprep.subr.mxu0 0.0
    %893 = vmatpush1.xpose.msra.mxu0 0.0
    %894 = vmatprep.subr.mxu0 0.0
    %895 = vmatpush1.xpose.msra.mxu0 0.0
    %896 = vmatprep.subr.mxu0 0.0
    %897 = vmatpush1.xpose.msra.mxu0 0.0
    %898 = vmatprep.subr.mxu0 0.0
    %899 = vmatpush1.xpose.msra.mxu0 0.0
    %900 = vmatprep.subr.mxu0 0.0
    %901 = vmatpush1.xpose.msra.mxu0 0.0
    %902 = vmatprep.subr.mxu0 0.0
    %903 = vmatpush1.xpose.msra.mxu0 0.0
    %904 = vmatprep.subr.mxu0 0.0
    %905 = vmatpush1.xpose.msra.mxu0 0.0
    %906 = vmatprep.subr.mxu0 0.0
    %907 = vmatpush1.xpose.msra.mxu0 0.0
    %908 = vmatprep.subr.mxu0 0.0
    %909 = vmatpush1.xpose.msra.mxu0 0.0
    %910 = vmatprep.subr.mxu0 0.0
    %911 = vmatpush1.xpose.msra.mxu0 0.0
    %912 = vmatprep.subr.mxu0 0.0
    %913 = vmatpush1.xpose.msra.mxu0 0.0
    %914 = vmatprep.subr.mxu0 0.0
    %915 = vmatpush1.xpose.msra.mxu0 0.0
    %916 = vmatprep.mubr.f32.mxu0 %v180
    %917 = vmatmul.mubr.f32.gmra.mrb[0].mxu0 %v178
    %v918 = vpop.f32.mrb[0].mxu0
    %v919 = vadd.f32 %v849, %v918
    %v920 = vpop.f32.mrb[0].mxu0
    %921 = vdwg.mxu0
    %922 = vmatprep.subr.mxu0 %v56
    %923 = vmatpush1.xpose.msra.mxu0 %v55
    %924 = vmatprep.subr.mxu0 %v80
    %925 = vmatpush1.xpose.msra.mxu0 %v79
    %926 = vmatprep.subr.mxu0 0.0
    %927 = vmatpush1.xpose.msra.mxu0 0.0
    %928 = vmatprep.subr.mxu0 0.0
    %929 = vmatpush1.xpose.msra.mxu0 0.0
    %930 = vmatprep.subr.mxu0 0.0
    %931 = vmatpush1.xpose.msra.mxu0 0.0
    %932 = vmatprep.subr.mxu0 0.0
    %933 = vmatpush1.xpose.msra.mxu0 0.0
    %934 = vmatprep.subr.mxu0 0.0
    %935 = vmatpush1.xpose.msra.mxu0 0.0
    %936 = vmatprep.subr.mxu0 0.0
    %937 = vmatpush1.xpose.msra.mxu0 0.0
    %938 = vmatprep.subr.mxu0 0.0
    %939 = vmatpush1.xpose.msra.mxu0 0.0
    %940 = vmatprep.subr.mxu0 0.0
    %941 = vmatpush1.xpose.msra.mxu0 0.0
    %942 = vmatprep.subr.mxu0 0.0
    %943 = vmatpush1.xpose.msra.mxu0 0.0
    %944 = vmatprep.subr.mxu0 0.0
    %945 = vmatpush1.xpose.msra.mxu0 0.0
    %946 = vmatprep.subr.mxu0 0.0
    %947 = vmatpush1.xpose.msra.mxu0 0.0
    %948 = vmatprep.subr.mxu0 0.0
    %949 = vmatpush1.xpose.msra.mxu0 0.0
    %950 = vmatprep.subr.mxu0 0.0
    %951 = vmatpush1.xpose.msra.mxu0 0.0
    %952 = vmatprep.subr.mxu0 0.0
    %953 = vmatpush1.xpose.msra.mxu0 0.0
    %954 = vmatprep.subr.mxu0 0.0
    %955 = vmatpush1.xpose.msra.mxu0 0.0
    %956 = vmatprep.subr.mxu0 0.0
    %957 = vmatpush1.xpose.msra.mxu0 0.0
    %958 = vmatprep.subr.mxu0 0.0
    %959 = vmatpush1.xpose.msra.mxu0 0.0
    %960 = vmatprep.subr.mxu0 0.0
    %961 = vmatpush1.xpose.msra.mxu0 0.0
    %962 = vmatprep.subr.mxu0 0.0
    %963 = vmatpush1.xpose.msra.mxu0 0.0
    %964 = vmatprep.subr.mxu0 0.0
    %965 = vmatpush1.xpose.msra.mxu0 0.0
    %966 = vmatprep.subr.mxu0 0.0
    %967 = vmatpush1.xpose.msra.mxu0 0.0
    %968 = vmatprep.subr.mxu0 0.0
    %969 = vmatpush1.xpose.msra.mxu0 0.0
    %970 = vmatprep.subr.mxu0 0.0
    %971 = vmatpush1.xpose.msra.mxu0 0.0
    %972 = vmatprep.subr.mxu0 0.0
    %973 = vmatpush1.xpose.msra.mxu0 0.0
    %974 = vmatprep.subr.mxu0 0.0
    %975 = vmatpush1.xpose.msra.mxu0 0.0
    %976 = vmatprep.subr.mxu0 0.0
    %977 = vmatpush1.xpose.msra.mxu0 0.0
    %978 = vmatprep.subr.mxu0 0.0
    %979 = vmatpush1.xpose.msra.mxu0 0.0
    %980 = vmatprep.subr.mxu0 0.0
    %981 = vmatpush1.xpose.msra.mxu0 0.0
    %982 = vmatprep.subr.mxu0 0.0
    %983 = vmatpush1.xpose.msra.mxu0 0.0
    %984 = vmatprep.subr.mxu0 0.0
    %985 = vmatpush1.xpose.msra.mxu0 0.0
    %986 = vmatprep.mubr.f32.mxu0 %v196
    %987 = vmatmul.mubr.f32.gmra.mrb[0].mxu0 %v188
    %v988 = vpop.f32.mrb[0].mxu0
    %v989 = vadd.f32 %v919, %v988
    %v990 = vpop.f32.mrb[0].mxu0
    %991 = vdwg.mxu0
    %992 = vmatprep.subr.mxu0 %v58
    %993 = vmatpush1.xpose.msra.mxu0 %v57
    %994 = vmatprep.subr.mxu0 %v82
    %995 = vmatpush1.xpose.msra.mxu0 %v81
    %996 = vmatprep.subr.mxu0 0.0
    %997 = vmatpush1.xpose.msra.mxu0 0.0
    %998 = vmatprep.subr.mxu0 0.0
    %999 = vmatpush1.xpose.msra.mxu0 0.0
    %1000 = vmatprep.subr.mxu0 0.0
    %1001 = vmatpush1.xpose.msra.mxu0 0.0
    %1002 = vmatprep.subr.mxu0 0.0
    %1003 = vmatpush1.xpose.msra.mxu0 0.0
    %1004 = vmatprep.subr.mxu0 0.0
    %1005 = vmatpush1.xpose.msra.mxu0 0.0
    %1006 = vmatprep.subr.mxu0 0.0
    %1007 = vmatpush1.xpose.msra.mxu0 0.0
    %1008 = vmatprep.subr.mxu0 0.0
    %1009 = vmatpush1.xpose.msra.mxu0 0.0
    %1010 = vmatprep.subr.mxu0 0.0
    %1011 = vmatpush1.xpose.msra.mxu0 0.0
    %1012 = vmatprep.subr.mxu0 0.0
    %1013 = vmatpush1.xpose.msra.mxu0 0.0
    %1014 = vmatprep.subr.mxu0 0.0
    %1015 = vmatpush1.xpose.msra.mxu0 0.0
    %1016 = vmatprep.subr.mxu0 0.0
    %1017 = vmatpush1.xpose.msra.mxu0 0.0
    %1018 = vmatprep.subr.mxu0 0.0
    %1019 = vmatpush1.xpose.msra.mxu0 0.0
    %1020 = vmatprep.subr.mxu0 0.0
    %1021 = vmatpush1.xpose.msra.mxu0 0.0
    %1022 = vmatprep.subr.mxu0 0.0
    %1023 = vmatpush1.xpose.msra.mxu0 0.0
    %1024 = vmatprep.subr.mxu0 0.0
    %1025 = vmatpush1.xpose.msra.mxu0 0.0
    %1026 = vmatprep.subr.mxu0 0.0
    %1027 = vmatpush1.xpose.msra.mxu0 0.0
    %1028 = vmatprep.subr.mxu0 0.0
    %1029 = vmatpush1.xpose.msra.mxu0 0.0
    %1030 = vmatprep.subr.mxu0 0.0
    %1031 = vmatpush1.xpose.msra.mxu0 0.0
    %1032 = vmatprep.subr.mxu0 0.0
    %1033 = vmatpush1.xpose.msra.mxu0 0.0
    %1034 = vmatprep.subr.mxu0 0.0
    %1035 = vmatpush1.xpose.msra.mxu0 0.0
    %1036 = vmatprep.subr.mxu0 0.0
    %1037 = vmatpush1.xpose.msra.mxu0 0.0
    %1038 = vmatprep.subr.mxu0 0.0
    %1039 = vmatpush1.xpose.msra.mxu0 0.0
    %1040 = vmatprep.subr.mxu0 0.0
    %1041 = vmatpush1.xpose.msra.mxu0 0.0
    %1042 = vmatprep.subr.mxu0 0.0
    %1043 = vmatpush1.xpose.msra.mxu0 0.0
    %1044 = vmatprep.subr.mxu0 0.0
    %1045 = vmatpush1.xpose.msra.mxu0 0.0
    %1046 = vmatprep.subr.mxu0 0.0
    %1047 = vmatpush1.xpose.msra.mxu0 0.0
    %1048 = vmatprep.subr.mxu0 0.0
    %1049 = vmatpush1.xpose.msra.mxu0 0.0
    %1050 = vmatprep.subr.mxu0 0.0
    %1051 = vmatpush1.xpose.msra.mxu0 0.0
    %1052 = vmatprep.subr.mxu0 0.0
    %1053 = vmatpush1.xpose.msra.mxu0 0.0
    %1054 = vmatprep.subr.mxu0 0.0
    %1055 = vmatpush1.xpose.msra.mxu0 0.0
    %1056 = vmatprep.mubr.f32.mxu0 %v197
    %1057 = vmatmul.mubr.f32.gmra.mrb[0].mxu0 %v195
    %v1058 = vpop.f32.mrb[0].mxu0
    %v1059 = vadd.f32 %v989, %v1058
    %v1060 = vpop.f32.mrb[0].mxu0
    %1061 = vdwg.mxu0
    %vm1062 = vcmask 74752
    %1063 = vst.msk [vmem:[#allocation5] sm:$0x3] %vm1062, %v1059
    // Predicated region
    $region18: #{linear_model_forward.1} parent=1 // pred_check
      _
    $region19: #{linear_model_forward.1} parent=1 // pred_check_branch
      %1065 = sbr.rel (0) target = $region21
    $region20: #{linear_model_forward.1} parent=1 // pred_region
      %s1067 = ssub.s32 32, 32
      %1068 = vsyncadd [#allocation4], %s1067
      %s1070 = sshll.u32 [#allocation5], 4
      %s1071 = int_to_ptr.vmem [resolvable:$true] %s1070
      %1073 = dma.vmem_to_hbm [thread:$0]  %s1071, 32, %s3, [#allocation4]
    $region21: #{linear_model_forward.1} parent=1 // pred_fallthru
      _
    // Predicated region
    $region22: #{linear_model_forward.1} parent=1 // pred_check
      _
    $region23: #{linear_model_forward.1} parent=1 // pred_check_branch
      %1075 = sbr.rel (0) target = $region25
    $region24: #{linear_model_forward.1} parent=1 // pred_region
      %1076 = dma.done [#allocation4], 32
    $region25: #{linear_model_forward.1} parent=1 // pred_fallthru
      _
    %1077 = vsyncpa [#allocation3], 1
    %1078 = vsyncpa [#allocation4], 1

</llo_original>
